<compile_context>
chip_gen: v5e
topology: v5e:2x2
jax: 0.10.0
libtpu: 0.0.40
codegen_flags: <defaults>
</compile_context>

<pallas_src>
import jax
import jax.numpy as jnp
from jax.experimental import pallas as pl
from jax.experimental.pallas import tpu as pltpu


# ----------------------------------------------------------------------------
# Kernel
# ----------------------------------------------------------------------------
def bc_forward_kernel(x_ref, wt_ref, bt_ref, wa_ref, ba_ref, whf_ref, bb_ref,
                      o_ref):
    cdt = wt_ref.dtype  # compute dtype for MXU operands (bf16)

    x = x_ref[...].astype(cdt)

    # Trunk: Linear -> ReLU -> Linear -> ReLU  (f32 accumulation + epilogue)
    h = jnp.dot(x, wt_ref[0], preferred_element_type=jnp.float32) + bt_ref[0]
    h = jnp.maximum(h, 0.0)
    h = jnp.dot(h.astype(cdt), wt_ref[1],
                preferred_element_type=jnp.float32) + bt_ref[1]
    h = jnp.maximum(h, 0.0)

    # All 4 head first layers fused: (B, obs) @ (obs, 4*512) -> (B, 4*512)
    t = jnp.dot(h.astype(cdt), wa_ref[...],
                preferred_element_type=jnp.float32) + ba_ref[...]
    t = jnp.maximum(t, 0.0)

    # Head second layers on VPU + XLU (no MXU pass, no bf16 recast of t):
    # elementwise multiply by the flattened per-head weight row, then reduce
    # each lane-aligned 512-wide chunk.
    tw = t * whf_ref[...]                       # (tile_b, 4*512) f32, VPU
    nheads = o_ref.shape[1]
    hidden = whf_ref.shape[1] // nheads
    cols = []
    for i in range(nheads):                     # static unroll over 4 heads
        cols.append(jnp.sum(tw[:, i * hidden:(i + 1) * hidden],
                            axis=-1, keepdims=True))
    o = jnp.concatenate(cols, axis=-1) + bb_ref[...]   # (tile_b, 4)
    o_ref[...] = o.astype(o_ref.dtype)


# ----------------------------------------------------------------------------
# Wrapper
# ----------------------------------------------------------------------------
def bc_forward(x, packed):
    """x: (B, obs) f32. packed: (wt, bt, wa_cat, ba_cat, wh_flat, bb_cat)."""
    wt, bt, wa, ba, whf, bb = packed
    B, obs = x.shape
    nheads = bb.shape[1]
    hidden = whf.shape[1] // nheads

    # Batch tiling (no wrapper-side padding; ragged last block handled by
    # Pallas with padded loads / masked writeback):
    #   * B <= 512: a single full-dim block, except that moderate batches
    #     (128..512, divisible by 16) are split into exactly 2 parallel blocks
    #     so v7x's second TensorCore is used.
    #   * B > 512:  512-row parallel blocks (largest tile that stays well
    #     under every generation's scoped VMEM at ~9-12 MB of temporaries).
    MAX_TILE = 512
    if B <= MAX_TILE:
        if B >= 128 and B % 16 == 0:
            tile_b = B // 2          # 2 parallel grid steps (multiple of 8)
        else:
            tile_b = B               # single block == full array dim (legal)
    else:
        tile_b = MAX_TILE

    grid = (pl.cdiv(B, tile_b),)

    const2 = lambda i: (0, 0)
    const3 = lambda i: (0, 0, 0)

    param_bytes = sum(int(p.size) * p.dtype.itemsize for p in packed)
    cost = pl.CostEstimate(
        flops=2 * B * (2 * obs * obs + obs * nheads * hidden + nheads * hidden),
        transcendentals=0,
        bytes_accessed=int(x.size) * x.dtype.itemsize + param_bytes
                       + B * nheads * 4,
    )

    out = pl.pallas_call(
        bc_forward_kernel,
        out_shape=jax.ShapeDtypeStruct((B, nheads), jnp.float32),
        grid_spec=pltpu.PrefetchScalarGridSpec(
            num_scalar_prefetch=0,
            grid=grid,
            in_specs=[
                pl.BlockSpec((tile_b, obs), lambda i: (i, 0)),  # x
                pl.BlockSpec(wt.shape, const3),   # trunk W   (2, obs, obs)  bf16
                pl.BlockSpec(bt.shape, const3),   # trunk b   (2, 1, obs)    f32
                pl.BlockSpec(wa.shape, const2),   # head-A W  (obs, 4*512)   bf16
                pl.BlockSpec(ba.shape, const2),   # head-A b  (1, 4*512)     f32
                pl.BlockSpec(whf.shape, const2),  # head-B W  (1, 4*512)     f32
                pl.BlockSpec(bb.shape, const2),   # head-B b  (1, 4)         f32
            ],
            # NOTE: (tile_b, 4) output uses masked vst.msk stores; acceptable
            # because the output is tiny (kernel is not store-bound).
            out_specs=pl.BlockSpec((tile_b, nheads), lambda i: (i, 0)),
        ),
        compiler_params=pltpu.CompilerParams(
            dimension_semantics=("parallel",),
            vmem_limit_bytes=32 * 1024 * 1024,
        ),
        cost_estimate=cost,
    )(x, wt, bt, wa, ba, whf, bb)

    return tuple(out[:, i:i + 1] for i in range(nheads))


# ----------------------------------------------------------------------------
# Parameter construction / packing
# ----------------------------------------------------------------------------
def init_params(key, obs_dim, hidden=512):
    """Deterministic synthetic f32 parameters in original per-layer layout."""
    keys = jax.random.split(key, 20)
    kit = iter(keys)

    def lin(in_f, out_f):
        w = jax.random.normal(next(kit), (in_f, out_f), jnp.float32) / jnp.sqrt(in_f)
        b = jax.random.normal(next(kit), (1, out_f), jnp.float32) * 0.01
        return w, b

    w1, b1 = lin(obs_dim, obs_dim)
    w2, b2 = lin(obs_dim, obs_dim)
    params = [w1, b1, w2, b2]
    for _ in range(4):
        wa, ba = lin(obs_dim, hidden)
        wb, bb = lin(hidden, 1)
        params += [wa, ba, wb, bb]
    return tuple(params)


def pack_params(params, compute_dtype=jnp.bfloat16):
    """Pack 20 per-layer params into 6 kernel-friendly fused arrays (one-time)."""
    w1, b1, w2, b2 = params[0:4]
    wt = jnp.stack([w1, w2]).astype(compute_dtype)        # (2, obs, obs)
    bt = jnp.stack([b1, b2])                              # (2, 1, obs)  f32

    was, bas, wbs, bbs = [], [], [], []
    for i in range(4):
        wa, ba, wb, bb = params[4 + 4 * i: 8 + 4 * i]
        was.append(wa); bas.append(ba); wbs.append(wb); bbs.append(bb)

    wa_cat = jnp.concatenate(was, axis=1).astype(compute_dtype)   # (obs, 4*512)
    ba_cat = jnp.concatenate(bas, axis=1)                         # (1, 4*512) f32

    # Head second-layer weights flattened for the VPU multiply + lane reduce
    # (kept in f32; they never touch the MXU).
    wh_flat = jnp.concatenate([wb[:, 0] for wb in wbs],
                              axis=0).reshape(1, -1)              # (1, 4*512) f32
    bb_cat = jnp.concatenate(bbs, axis=1)                         # (1, 4) f32

    return (wt, bt, wa_cat, ba_cat, wh_flat, bb_cat)


# ----------------------------------------------------------------------------
# References
# ----------------------------------------------------------------------------
def bc_forward_ref_packed(x, packed):
    """Pure-JAX reference with the exact same packed/bf16 math as the kernel."""
    wt, bt, wa, ba, whf, bb = packed
    cdt = wt.dtype
    nheads = bb.shape[1]
    hidden = whf.shape[1] // nheads
    h = jnp.maximum(jnp.dot(x.astype(cdt), wt[0],
                            preferred_element_type=jnp.float32) + bt[0], 0.0)
    h = jnp.maximum(jnp.dot(h.astype(cdt), wt[1],
                            preferred_element_type=jnp.float32) + bt[1], 0.0)
    t = jnp.maximum(jnp.dot(h.astype(cdt), wa,
                            preferred_element_type=jnp.float32) + ba, 0.0)
    tw = t * whf
    cols = [jnp.sum(tw[:, i * hidden:(i + 1) * hidden], axis=-1, keepdims=True)
            for i in range(nheads)]
    o = jnp.concatenate(cols, axis=-1) + bb
    return tuple(o[:, i:i + 1] for i in range(nheads))


def bc_forward_ref_f32(x, params):
    """Full-f32 reference in the original (unfused) layer layout."""
    w1, b1, w2, b2 = params[0:4]
    h = jnp.maximum(x @ w1 + b1, 0.0)
    h = jnp.maximum(h @ w2 + b2, 0.0)
    outs = []
    for i in range(4):
        wa, ba, wb, bb = params[4 + 4 * i: 8 + 4 * i]
        t = jnp.maximum(h @ wa + ba, 0.0)
        outs.append(t @ wb + bb)
    return tuple(outs)


# ----------------------------------------------------------------------------
if __name__ == "__main__":
    B = 8
    OBS_DIM = 32
    HIDDEN = 512

    key = jax.random.PRNGKey(0)
    k_x, k_p = jax.random.split(key)
    x = jax.random.normal(k_x, (B, OBS_DIM), jnp.float32)
    params = init_params(k_p, OBS_DIM, HIDDEN)
    packed = pack_params(params)

    outs = jax.block_until_ready(bc_forward(x, packed))

    # Exact-path check (same fused / bf16-weight math as the kernel).
    refs = bc_forward_ref_packed(x, packed)
    for o, r in zip(outs, refs):
        assert o.shape == (B, 1)
        assert jnp.allclose(o, r, atol=1e-3, rtol=1e-3)

    # Semantic check vs. the original full-f32 per-head formulation
    # (tolerance covers bf16 weight storage).
    refs32 = bc_forward_ref_f32(x, params)
    for o, r in zip(outs, refs32):
        assert jnp.allclose(o, r, atol=1e-1, rtol=1e-1)

    print("KERNEL_OK")
</pallas_src>

<mosaic_0001>
module attributes {stable_mosaic.version = 11 : i64} {
  func.func @bc_forward_kernel(%arg0: i32, %arg1: memref<8x32xf32, #tpu.memory_space<vmem>>, %arg2: memref<2x32x32xbf16, #tpu.memory_space<vmem>>, %arg3: memref<2x1x32xf32, #tpu.memory_space<vmem>>, %arg4: memref<32x2048xbf16, #tpu.memory_space<vmem>>, %arg5: memref<1x2048xf32, #tpu.memory_space<vmem>>, %arg6: memref<1x2048xf32, #tpu.memory_space<vmem>>, %arg7: memref<1x4xf32, #tpu.memory_space<vmem>>, %arg8: memref<8x4xf32, #tpu.memory_space<vmem>>) attributes {dimension_semantics = [#tpu.dimension_semantics<parallel>], iteration_bounds = array<i64: 1>, scalar_prefetch = 0 : i64, scratch_operands = 0 : i64, tpu.core_type = #tpu.core_type<tc>, window_params = [{transform_indices = @transform_0, window_bounds = array<i64: 8, 32>}, {pipeline_mode = #tpu.pipeline_mode<synchronous>, transform_indices = @transform_1, window_bounds = array<i64: 2, 32, 32>}, {pipeline_mode = #tpu.pipeline_mode<synchronous>, transform_indices = @transform_2, window_bounds = array<i64: 2, 1, 32>}, {pipeline_mode = #tpu.pipeline_mode<synchronous>, transform_indices = @transform_3, window_bounds = array<i64: 32, 2048>}, {pipeline_mode = #tpu.pipeline_mode<synchronous>, transform_indices = @transform_4, window_bounds = array<i64: 1, 2048>}, {pipeline_mode = #tpu.pipeline_mode<synchronous>, transform_indices = @transform_5, window_bounds = array<i64: 1, 2048>}, {pipeline_mode = #tpu.pipeline_mode<synchronous>, transform_indices = @transform_6, window_bounds = array<i64: 1, 4>}, {transform_indices = @transform_7, window_bounds = array<i64: 8, 4>}]} {
    %c0 = arith.constant 0 : index
    %c0_0 = arith.constant 0 : index
    %0 = vector.load %arg1[%c0, %c0_0] : memref<8x32xf32, #tpu.memory_space<vmem>>, vector<8x32xf32>
    %1 = arith.truncf %0 : vector<8x32xf32> to vector<8x32xbf16>
    %c0_1 = arith.constant 0 : index
    %c0_2 = arith.constant 0 : index
    %c0_3 = arith.constant 0 : index
    %2 = vector.load %arg2[%c0_1, %c0_2, %c0_3] : memref<2x32x32xbf16, #tpu.memory_space<vmem>>, vector<1x32x32xbf16>
    %3 = vector.shape_cast %2 : vector<1x32x32xbf16> to vector<32x32xbf16>
    %cst = arith.constant dense<0.000000e+00> : vector<8x32xf32>
    %4 = tpu.matmul %1, %3, %cst {dimension_numbers = #tpu.dot_dimension_numbers<[1], [0], [0], [1], [0, 0, 1, 1], [], []>} : vector<8x32xbf16>, vector<32x32xbf16>, vector<8x32xf32> -> vector<8x32xf32>
    %c0_4 = arith.constant 0 : index
    %c0_5 = arith.constant 0 : index
    %c0_6 = arith.constant 0 : index
    %5 = vector.load %arg3[%c0_4, %c0_5, %c0_6] : memref<2x1x32xf32, #tpu.memory_space<vmem>>, vector<1x1x32xf32>
    %6 = vector.shape_cast %5 : vector<1x1x32xf32> to vector<1x32xf32>
    %7 = vector.broadcast %6 : vector<1x32xf32> to vector<8x32xf32>
    %8 = arith.addf %4, %7 : vector<8x32xf32>
    %cst_7 = arith.constant 0.000000e+00 : f32
    %9 = vector.broadcast %cst_7 : f32 to vector<8x32xf32>
    %10 = arith.maximumf %8, %9 : vector<8x32xf32>
    %11 = arith.truncf %10 : vector<8x32xf32> to vector<8x32xbf16>
    %c1 = arith.constant 1 : index
    %c0_8 = arith.constant 0 : index
    %c0_9 = arith.constant 0 : index
    %12 = vector.load %arg2[%c1, %c0_8, %c0_9] : memref<2x32x32xbf16, #tpu.memory_space<vmem>>, vector<1x32x32xbf16>
    %13 = vector.shape_cast %12 : vector<1x32x32xbf16> to vector<32x32xbf16>
    %cst_10 = arith.constant dense<0.000000e+00> : vector<8x32xf32>
    %14 = tpu.matmul %11, %13, %cst_10 {dimension_numbers = #tpu.dot_dimension_numbers<[1], [0], [0], [1], [0, 0, 1, 1], [], []>} : vector<8x32xbf16>, vector<32x32xbf16>, vector<8x32xf32> -> vector<8x32xf32>
    %c1_11 = arith.constant 1 : index
    %c0_12 = arith.constant 0 : index
    %c0_13 = arith.constant 0 : index
    %15 = vector.load %arg3[%c1_11, %c0_12, %c0_13] : memref<2x1x32xf32, #tpu.memory_space<vmem>>, vector<1x1x32xf32>
    %16 = vector.shape_cast %15 : vector<1x1x32xf32> to vector<1x32xf32>
    %17 = vector.broadcast %16 : vector<1x32xf32> to vector<8x32xf32>
    %18 = arith.addf %14, %17 : vector<8x32xf32>
    %cst_14 = arith.constant 0.000000e+00 : f32
    %19 = vector.broadcast %cst_14 : f32 to vector<8x32xf32>
    %20 = arith.maximumf %18, %19 : vector<8x32xf32>
    %21 = arith.truncf %20 : vector<8x32xf32> to vector<8x32xbf16>
    %c0_15 = arith.constant 0 : index
    %c0_16 = arith.constant 0 : index
    %22 = vector.load %arg4[%c0_15, %c0_16] : memref<32x2048xbf16, #tpu.memory_space<vmem>>, vector<32x2048xbf16>
    %cst_17 = arith.constant dense<0.000000e+00> : vector<8x2048xf32>
    %23 = tpu.matmul %21, %22, %cst_17 {dimension_numbers = #tpu.dot_dimension_numbers<[1], [0], [0], [1], [0, 0, 1, 1], [], []>} : vector<8x32xbf16>, vector<32x2048xbf16>, vector<8x2048xf32> -> vector<8x2048xf32>
    %c0_18 = arith.constant 0 : index
    %c0_19 = arith.constant 0 : index
    %24 = vector.load %arg5[%c0_18, %c0_19] : memref<1x2048xf32, #tpu.memory_space<vmem>>, vector<1x2048xf32>
    %25 = vector.broadcast %24 : vector<1x2048xf32> to vector<8x2048xf32>
    %26 = arith.addf %23, %25 : vector<8x2048xf32>
    %cst_20 = arith.constant 0.000000e+00 : f32
    %27 = vector.broadcast %cst_20 : f32 to vector<8x2048xf32>
    %28 = arith.maximumf %26, %27 : vector<8x2048xf32>
    %c0_21 = arith.constant 0 : index
    %c0_22 = arith.constant 0 : index
    %29 = vector.load %arg6[%c0_21, %c0_22] : memref<1x2048xf32, #tpu.memory_space<vmem>>, vector<1x2048xf32>
    %30 = vector.broadcast %29 : vector<1x2048xf32> to vector<8x2048xf32>
    %31 = arith.mulf %28, %30 : vector<8x2048xf32>
    %32 = vector.extract_strided_slice %31 {offsets = [0, 0], sizes = [8, 512], strides = [1, 1]} : vector<8x2048xf32> to vector<8x512xf32>
    %cst_23 = arith.constant dense<0.000000e+00> : vector<8xf32>
    %33 = vector.multi_reduction <add>, %32, %cst_23 [1] : vector<8x512xf32> to vector<8xf32>
    %34 = vector.shape_cast %33 : vector<8xf32> to vector<8x1xf32>
    %35 = vector.extract_strided_slice %31 {offsets = [0, 512], sizes = [8, 512], strides = [1, 1]} : vector<8x2048xf32> to vector<8x512xf32>
    %cst_24 = arith.constant dense<0.000000e+00> : vector<8xf32>
    %36 = vector.multi_reduction <add>, %35, %cst_24 [1] : vector<8x512xf32> to vector<8xf32>
    %37 = vector.shape_cast %36 : vector<8xf32> to vector<8x1xf32>
    %38 = vector.extract_strided_slice %31 {offsets = [0, 1024], sizes = [8, 512], strides = [1, 1]} : vector<8x2048xf32> to vector<8x512xf32>
    %cst_25 = arith.constant dense<0.000000e+00> : vector<8xf32>
    %39 = vector.multi_reduction <add>, %38, %cst_25 [1] : vector<8x512xf32> to vector<8xf32>
    %40 = vector.shape_cast %39 : vector<8xf32> to vector<8x1xf32>
    %41 = vector.extract_strided_slice %31 {offsets = [0, 1536], sizes = [8, 512], strides = [1, 1]} : vector<8x2048xf32> to vector<8x512xf32>
    %cst_26 = arith.constant dense<0.000000e+00> : vector<8xf32>
    %42 = vector.multi_reduction <add>, %41, %cst_26 [1] : vector<8x512xf32> to vector<8xf32>
    %43 = vector.shape_cast %42 : vector<8xf32> to vector<8x1xf32>
    %44 = tpu.concatenate %34, %37, %40, %43 in 1 : vector<8x1xf32>, vector<8x1xf32>, vector<8x1xf32>, vector<8x1xf32> -> vector<8x4xf32>
    %c0_27 = arith.constant 0 : index
    %c0_28 = arith.constant 0 : index
    %45 = vector.load %arg7[%c0_27, %c0_28] : memref<1x4xf32, #tpu.memory_space<vmem>>, vector<1x4xf32>
    %46 = vector.broadcast %45 : vector<1x4xf32> to vector<8x4xf32>
    %47 = arith.addf %44, %46 : vector<8x4xf32>
    %c0_29 = arith.constant 0 : index
    %c0_30 = arith.constant 0 : index
    %48 = vector.load %arg8[%c0_29, %c0_30] : memref<8x4xf32, #tpu.memory_space<vmem>>, vector<8x4xf32>
    tpu.vector_store %arg8[%c0_29, %c0_30], %47 {strides = array<i32>} : memref<8x4xf32, #tpu.memory_space<vmem>>, vector<8x4xf32>,
    return
  }
  func.func @transform_0(%arg0: i32) -> (i32, i32) {
    %c0_i32 = arith.constant 0 : i32
    %c0_i32_0 = arith.constant 0 : i32
    return %arg0, %c0_i32 : i32, i32
  }
  func.func @transform_1(%arg0: i32) -> (i32, i32, i32) {
    %c0_i32 = arith.constant 0 : i32
    %c0_i32_0 = arith.constant 0 : i32
    %c0_i32_1 = arith.constant 0 : i32
    %c0_i32_2 = arith.constant 0 : i32
    return %c0_i32, %c0_i32_0, %c0_i32_1 : i32, i32, i32
  }
  func.func @transform_2(%arg0: i32) -> (i32, i32, i32) {
    %c0_i32 = arith.constant 0 : i32
    %c0_i32_0 = arith.constant 0 : i32
    %c0_i32_1 = arith.constant 0 : i32
    %c0_i32_2 = arith.constant 0 : i32
    return %c0_i32, %c0_i32_0, %c0_i32_1 : i32, i32, i32
  }
  func.func @transform_3(%arg0: i32) -> (i32, i32) {
    %c0_i32 = arith.constant 0 : i32
    %c0_i32_0 = arith.constant 0 : i32
    %c0_i32_1 = arith.constant 0 : i32
    return %c0_i32, %c0_i32_0 : i32, i32
  }
  func.func @transform_4(%arg0: i32) -> (i32, i32) {
    %c0_i32 = arith.constant 0 : i32
    %c0_i32_0 = arith.constant 0 : i32
    %c0_i32_1 = arith.constant 0 : i32
    return %c0_i32, %c0_i32_0 : i32, i32
  }
  func.func @transform_5(%arg0: i32) -> (i32, i32) {
    %c0_i32 = arith.constant 0 : i32
    %c0_i32_0 = arith.constant 0 : i32
    %c0_i32_1 = arith.constant 0 : i32
    return %c0_i32, %c0_i32_0 : i32, i32
  }
  func.func @transform_6(%arg0: i32) -> (i32, i32) {
    %c0_i32 = arith.constant 0 : i32
    %c0_i32_0 = arith.constant 0 : i32
    %c0_i32_1 = arith.constant 0 : i32
    return %c0_i32, %c0_i32_0 : i32, i32
  }
  func.func @transform_7(%arg0: i32) -> (i32, i32) {
    %c0_i32 = arith.constant 0 : i32
    %c0_i32_0 = arith.constant 0 : i32
    return %arg0, %c0_i32 : i32, i32
  }
}

</mosaic_0001>

<llo_original>
// kernel: tpu_custom_call.1
$region0: #{tpu_custom_call.1}
  #allocation0 [shape = 'u32[]', space=smem, size = 0x4, offset = 0x4, fixed_abs, tag = 'smem constant byte address 0x4 - core index']
  #allocation1 [shape = 'u32[72,128]{1,0:T(1,128)}', space=vmem, size = 0x9000, scoped, tag = 'internal scratch']
  %s0 = inlined_call_operand.hbm [shape: f32[8,32], index: 0, kind: input, shape index: {}]
  %s1 = inlined_call_operand.hbm [shape: bf16[2,32,32], index: 1, kind: input, shape index: {}]
  %s2 = inlined_call_operand.hbm [shape: f32[2,1,32], index: 2, kind: input, shape index: {}]
  %s3 = inlined_call_operand.hbm [shape: bf16[32,2048], index: 3, kind: input, shape index: {}]
  %s4 = inlined_call_operand.hbm [shape: f32[1,2048], index: 4, kind: input, shape index: {}]
  %s5 = inlined_call_operand.hbm [shape: f32[1,2048], index: 5, kind: input, shape index: {}]
  %s6 = inlined_call_operand.vmem [shape: f32[1,4], index: 6, kind: input, shape index: {}]
  %s7 = inlined_call_operand.vmem [shape: f32[8,4], index: 7, kind: output, shape index: {}]
  %s8 = sld [smem:[#allocation0]]
  $region62: #{tpu_custom_call.1} parent=0
    _
  %s10 = ssub.s32 1, %s8
  %s11 = scalar_select 0, %s10, %s8
  $region1: #{tpu_custom_call.1} parent=0
    #allocation2 [shape = 'u8[4096]{0}', space=vmem, size = 0x1000, scoped, tag = 'input window, operand 0, single buffered']
    #allocation3 [shape = 's32[1]{0}', space=sflag, size = 0x4, scoped, tag = 'scoped memory for tpu_custom_call.1']
    #allocation4 [shape = 'u8[16384]{0}', space=vmem, size = 0x4000, scoped, tag = 'input window, operand 1, single buffered']
    #allocation5 [shape = 's32[1]{0}', space=sflag, size = 0x4, scoped, tag = 'scoped memory for tpu_custom_call.1']
    #allocation6 [shape = 'u8[1024]{0}', space=vmem, size = 0x400, scoped, tag = 'input window, operand 2, single buffered']
    #allocation7 [shape = 'u8[131072]{0}', space=vmem, size = 0x20000, scoped, tag = 'input window, operand 3, single buffered']
    #allocation8 [shape = 's32[1]{0}', space=sflag, size = 0x4, scoped, tag = 'scoped memory for tpu_custom_call.1']
    #allocation9 [shape = 'u8[8192]{0}', space=vmem, size = 0x2000, scoped, tag = 'input window, operand 4, single buffered']
    #allocation10 [shape = 'u8[8192]{0}', space=vmem, size = 0x2000, scoped, tag = 'input window, operand 5, single buffered']
    #allocation11 [shape = 's32[1]{0}', space=sflag, size = 0x4, scoped, tag = 'scoped memory for tpu_custom_call.1']
    %12 = vsyncpa [#allocation3], 0
    %13 = vsyncpa [#allocation5], 0
    %14 = vsyncpa [#allocation8], 0
    %15 = vsyncpa [#allocation11], 0
    // Predicated region
    $region2: #{tpu_custom_call.1} parent=1 // pred_check
      _
    $region3: #{tpu_custom_call.1} parent=1 // pred_check_branch
      %17 = sbr.rel (0) target = $region5
    $region4: #{tpu_custom_call.1} parent=1 // pred_region
      %19 = vsyncadd [#allocation3], 0
      %s21 = sshll.u32 %s0, 4
      %s22 = int_to_ptr.hbm [resolvable:$true] %s21
      %s23 = sshll.u32 [#allocation2], 4
      %s24 = int_to_ptr.vmem [resolvable:$true] %s23
      %26 = dma.hbm_to_vmem [thread:$0]  %s22, 128, %s24, [#allocation3]
    $region5: #{tpu_custom_call.1} parent=1 // pred_fallthru
      _
    // Predicated region
    $region6: #{tpu_custom_call.1} parent=1 // pred_check
      _
    $region7: #{tpu_custom_call.1} parent=1 // pred_check_branch
      %28 = sbr.rel (0) target = $region9
    $region8: #{tpu_custom_call.1} parent=1 // pred_region
      %30 = vsyncadd [#allocation5], 0
      %s31 = sshll.u32 %s1, 4
      %s32 = int_to_ptr.hbm [resolvable:$true] %s31
      %s33 = sshll.u32 [#allocation4], 4
      %s34 = int_to_ptr.vmem [resolvable:$true] %s33
      %39 = dma.hbm_to_vmem [thread:$0]  %s32, 512, %s34, [#allocation5], 64, 64, 4
    $region9: #{tpu_custom_call.1} parent=1 // pred_fallthru
      _
    // Predicated region
    $region10: #{tpu_custom_call.1} parent=1 // pred_check
      _
    $region11: #{tpu_custom_call.1} parent=1 // pred_check_branch
      %41 = sbr.rel (0) target = $region13
    $region12: #{tpu_custom_call.1} parent=1 // pred_region
      %43 = vsyncadd [#allocation5], 0
      %s44 = sshll.u32 %s2, 4
      %s45 = int_to_ptr.hbm [resolvable:$true] %s44
      %s46 = sshll.u32 [#allocation6], 4
      %s47 = int_to_ptr.vmem [resolvable:$true] %s46
      %52 = dma.hbm_to_vmem [thread:$0]  %s45, 32, %s47, [#allocation5], 16, 16, 1
    $region13: #{tpu_custom_call.1} parent=1 // pred_fallthru
      _
    // Predicated region
    $region14: #{tpu_custom_call.1} parent=1 // pred_check
      _
    $region15: #{tpu_custom_call.1} parent=1 // pred_check_branch
      %54 = sbr.rel (0) target = $region17
    $region16: #{tpu_custom_call.1} parent=1 // pred_region
      %56 = vsyncadd [#allocation8], 0
      %s57 = sshll.u32 %s3, 4
      %s58 = int_to_ptr.hbm [resolvable:$true] %s57
      %s59 = sshll.u32 [#allocation7], 4
      %s60 = int_to_ptr.vmem [resolvable:$true] %s59
      %65 = dma.hbm_to_vmem [thread:$0]  %s58, 4096, %s60, [#allocation8], 1024, 1024, 64
    $region17: #{tpu_custom_call.1} parent=1 // pred_fallthru
      _
    // Predicated region
    $region18: #{tpu_custom_call.1} parent=1 // pred_check
      _
    $region19: #{tpu_custom_call.1} parent=1 // pred_check_branch
      %67 = sbr.rel (0) target = $region21
    $region20: #{tpu_custom_call.1} parent=1 // pred_region
      %69 = vsyncadd [#allocation8], 0
      %s71 = sshll.u32 %s4, 4
      %s72 = int_to_ptr.hbm [resolvable:$true] %s71
      %s73 = sshll.u32 [#allocation9], 4
      %s74 = int_to_ptr.vmem [resolvable:$true] %s73
      %76 = dma.hbm_to_vmem [thread:$0]  %s72, 256, %s74, [#allocation8]
    $region21: #{tpu_custom_call.1} parent=1 // pred_fallthru
      _
    // Predicated region
    $region22: #{tpu_custom_call.1} parent=1 // pred_check
      _
    $region23: #{tpu_custom_call.1} parent=1 // pred_check_branch
      %78 = sbr.rel (0) target = $region25
    $region24: #{tpu_custom_call.1} parent=1 // pred_region
      %80 = vsyncadd [#allocation11], 0
      %s82 = sshll.u32 %s5, 4
      %s83 = int_to_ptr.hbm [resolvable:$true] %s82
      %s84 = sshll.u32 [#allocation10], 4
      %s85 = int_to_ptr.vmem [resolvable:$true] %s84
      %87 = dma.hbm_to_vmem [thread:$0]  %s83, 256, %s85, [#allocation11]
    $region25: #{tpu_custom_call.1} parent=1 // pred_fallthru
      _
    // Predicated region
    $region26: #{tpu_custom_call.1} parent=1 // pred_check
      _
    $region27: #{tpu_custom_call.1} parent=1 // pred_check_branch
      %89 = sbr.rel (0) target = $region29
    $region28: #{tpu_custom_call.1} parent=1 // pred_region
      _
    $region29: #{tpu_custom_call.1} parent=1 // pred_fallthru
      _
    // Predicated region
    $region30: #{tpu_custom_call.1} parent=1 // pred_check
      _
    $region31: #{tpu_custom_call.1} parent=1 // pred_check_branch
      %91 = sbr.rel (0) target = $region33
    $region32: #{tpu_custom_call.1} parent=1 // pred_region
      %93 = dma.done [#allocation3], 128
    $region33: #{tpu_custom_call.1} parent=1 // pred_fallthru
      _
    // Predicated region
    $region34: #{tpu_custom_call.1} parent=1 // pred_check
      _
    $region35: #{tpu_custom_call.1} parent=1 // pred_check_branch
      %95 = sbr.rel (0) target = $region37
    $region36: #{tpu_custom_call.1} parent=1 // pred_region
      %97 = dma.done [#allocation5], 512
    $region37: #{tpu_custom_call.1} parent=1 // pred_fallthru
      _
    // Predicated region
    $region38: #{tpu_custom_call.1} parent=1 // pred_check
      _
    $region39: #{tpu_custom_call.1} parent=1 // pred_check_branch
      %99 = sbr.rel (0) target = $region41
    $region40: #{tpu_custom_call.1} parent=1 // pred_region
      %101 = dma.done [#allocation5], 32
    $region41: #{tpu_custom_call.1} parent=1 // pred_fallthru
      _
    // Predicated region
    $region42: #{tpu_custom_call.1} parent=1 // pred_check
      _
    $region43: #{tpu_custom_call.1} parent=1 // pred_check_branch
      %103 = sbr.rel (0) target = $region45
    $region44: #{tpu_custom_call.1} parent=1 // pred_region
      %105 = dma.done [#allocation8], 4096
    $region45: #{tpu_custom_call.1} parent=1 // pred_fallthru
      _
    // Predicated region
    $region46: #{tpu_custom_call.1} parent=1 // pred_check
      _
    $region47: #{tpu_custom_call.1} parent=1 // pred_check_branch
      %107 = sbr.rel (0) target = $region49
    $region48: #{tpu_custom_call.1} parent=1 // pred_region
      %109 = dma.done [#allocation8], 256
    $region49: #{tpu_custom_call.1} parent=1 // pred_fallthru
      _
    // Predicated region
    $region50: #{tpu_custom_call.1} parent=1 // pred_check
      _
    $region51: #{tpu_custom_call.1} parent=1 // pred_check_branch
      %111 = sbr.rel (0) target = $region53
    $region52: #{tpu_custom_call.1} parent=1 // pred_region
      %113 = dma.done [#allocation11], 256
    $region53: #{tpu_custom_call.1} parent=1 // pred_fallthru
      _
    %v115 = vld [vmem:[#allocation2] sm:$0xff]
    %v116 = vpack.c.bf16 %v115, %v115
    %v117 = vld [vmem:[#allocation4] sm:$0xf]
    %v118 = vld [vmem:[#allocation4 + $0x4] sm:$0xf]
    %v119 = vld [vmem:[#allocation4 + $0x8] sm:$0xf]
    %v120 = vld [vmem:[#allocation4 + $0xc] sm:$0xf]
    %v121 = vld [vmem:[#allocation6] sm:$0x1]
    %v123 = vperm.slane %v121, 0
    %v129 = vunpack.c.l.b16 %v117
    %v130 = vunpack.c.l.b16 %v118
    %v131 = vunpack.c.l.b16 %v119
    %v132 = vunpack.c.l.b16 %v120
    %v133 = vpack.c.b16 %v130, %v129
    %v134 = vpack.c.b16 %v132, %v131
    %vm137 = vcmask 261120
    %v139 = vsel %vm137, %v116, 0
    %141 = vmatpush.bf16.msra.mxu0 0
    %142 = vmatpush.bf16.msra.mxu0 0
    %143 = vmatpush.bf16.msra.mxu0 0
    %144 = vmatpush.bf16.msra.mxu0 0
    %145 = vmatpush.bf16.msra.mxu0 0
    %146 = vmatpush.bf16.msra.mxu0 0
    %147 = vmatpush.bf16.msra.mxu0 %v134
    %148 = vmatpush.bf16.msra.mxu0 %v133
    %149 = vmatmul.bf16.gmra.mxu0 %v139
    %v150 = vpop.f32.mrf.mxu0
    %v151 = vadd.f32 %v123, %v150
    %v152 = vpop.f32.mrf.mxu0
    %153 = vdwg.mxu0
    %v154 = vmax.f32 %v151, 0.0
    %v155 = vpack.c.bf16 %v154, %v154
    %s156 = scalar_lea.vmem [#allocation4], 16
    %v157 = vld [vmem:[%s156] sm:$0xf]
    %v158 = vld [vmem:[%s156 + $0x4] sm:$0xf]
    %v159 = vld [vmem:[%s156 + $0x8] sm:$0xf]
    %v160 = vld [vmem:[%s156 + $0xc] sm:$0xf]
    %s161 = scalar_lea.vmem [#allocation6], 1
    %v162 = vld [vmem:[%s161] sm:$0x1]
    %v164 = vperm.slane %v162, 0
    %v170 = vunpack.c.l.b16 %v157
    %v171 = vunpack.c.l.b16 %v158
    %v172 = vunpack.c.l.b16 %v159
    %v173 = vunpack.c.l.b16 %v160
    %v174 = vpack.c.b16 %v171, %v170
    %v175 = vpack.c.b16 %v173, %v172
    %v179 = vsel %vm137, %v155, 0
    %181 = vmatpush.bf16.msra.mxu0 0
    %182 = vmatpush.bf16.msra.mxu0 0
    %183 = vmatpush.bf16.msra.mxu0 0
    %184 = vmatpush.bf16.msra.mxu0 0
    %185 = vmatpush.bf16.msra.mxu0 0
    %186 = vmatpush.bf16.msra.mxu0 0
    %187 = vmatpush.bf16.msra.mxu0 %v175
    %188 = vmatpush.bf16.msra.mxu0 %v174
    %189 = vmatmul.bf16.gmra.mxu0 %v179
    %v190 = vpop.f32.mrf.mxu0
    %v191 = vadd.f32 %v164, %v190
    %v192 = vpop.f32.mrf.mxu0
    %193 = vdwg.mxu0
    %v194 = vmax.f32 %v191, 0.0
    %v195 = vpack.c.bf16 %v194, %v194
    %v196 = vld [vmem:[#allocation7] sm:$0xff]
    %v197 = vld [vmem:[#allocation7 + $0x8] sm:$0xff]
    %v198 = vld [vmem:[#allocation7 + $0x10] sm:$0xff]
    %v199 = vld [vmem:[#allocation7 + $0x18] sm:$0xff]
    %v200 = vld [vmem:[#allocation7 + $0x20] sm:$0xff]
    %v201 = vld [vmem:[#allocation7 + $0x28] sm:$0xff]
    %v202 = vld [vmem:[#allocation7 + $0x30] sm:$0xff]
    %v203 = vld [vmem:[#allocation7 + $0x38] sm:$0xff]
    %v204 = vld [vmem:[#allocation7 + $0x40] sm:$0xff]
    %v205 = vld [vmem:[#allocation7 + $0x48] sm:$0xff]
    %v206 = vld [vmem:[#allocation7 + $0x50] sm:$0xff]
    %v207 = vld [vmem:[#allocation7 + $0x58] sm:$0xff]
    %v208 = vld [vmem:[#allocation7 + $0x60] sm:$0xff]
    %v209 = vld [vmem:[#allocation7 + $0x68] sm:$0xff]
    %v210 = vld [vmem:[#allocation7 + $0x70] sm:$0xff]
    %v211 = vld [vmem:[#allocation7 + $0x78] sm:$0xff]
    %v212 = vld [vmem:[#allocation7 + $0x80] sm:$0xff]
    %v213 = vld [vmem:[#allocation7 + $0x88] sm:$0xff]
    %v214 = vld [vmem:[#allocation7 + $0x90] sm:$0xff]
    %v215 = vld [vmem:[#allocation7 + $0x98] sm:$0xff]
    %v216 = vld [vmem:[#allocation7 + $0xa0] sm:$0xff]
    %v217 = vld [vmem:[#allocation7 + $0xa8] sm:$0xff]
    %v218 = vld [vmem:[#allocation7 + $0xb0] sm:$0xff]
    %v219 = vld [vmem:[#allocation7 + $0xb8] sm:$0xff]
    %v220 = vld [vmem:[#allocation7 + $0xc0] sm:$0xff]
    %v221 = vld [vmem:[#allocation7 + $0xc8] sm:$0xff]
    %v222 = vld [vmem:[#allocation7 + $0xd0] sm:$0xff]
    %v223 = vld [vmem:[#allocation7 + $0xd8] sm:$0xff]
    %v224 = vld [vmem:[#allocation7 + $0xe0] sm:$0xff]
    %v225 = vld [vmem:[#allocation7 + $0xe8] sm:$0xff]
    %v226 = vld [vmem:[#allocation7 + $0xf0] sm:$0xff]
    %v227 = vld [vmem:[#allocation7 + $0xf8] sm:$0xff]
    %v228 = vld [vmem:[#allocation9] sm:$0xff]
    %v229 = vld [vmem:[#allocation9 + $0x8] sm:$0xff]
    %v232 = vperm.slane %v228, 0
    %v233 = vperm.slane %v228, 1
    %v234 = vperm.slane %v228, 2
    %v235 = vperm.slane %v228, 3
    %v236 = vperm.slane %v228, 4
    %v237 = vperm.slane %v228, 5
    %v238 = vperm.slane %v228, 6
    %v239 = vperm.slane %v228, 7
    %v240 = vperm.slane %v229, 0
    %v241 = vperm.slane %v229, 1
    %v242 = vperm.slane %v229, 2
    %v243 = vperm.slane %v229, 3
    %v244 = vperm.slane %v229, 4
    %v245 = vperm.slane %v229, 5
    %v246 = vperm.slane %v229, 6
    %v247 = vperm.slane %v229, 7
    %v296 = vunpack.c.l.b16 %v196
    %v297 = vunpack.c.h.b16 %v196
    %v298 = vunpack.c.l.b16 %v197
    %v299 = vunpack.c.h.b16 %v197
    %v300 = vunpack.c.l.b16 %v198
    %v301 = vunpack.c.h.b16 %v198
    %v302 = vunpack.c.l.b16 %v199
    %v303 = vunpack.c.h.b16 %v199
    %v304 = vunpack.c.l.b16 %v200
    %v305 = vunpack.c.h.b16 %v200
    %v306 = vunpack.c.l.b16 %v201
    %v307 = vunpack.c.h.b16 %v201
    %v308 = vunpack.c.l.b16 %v202
    %v309 = vunpack.c.h.b16 %v202
    %v310 = vunpack.c.l.b16 %v203
    %v311 = vunpack.c.h.b16 %v203
    %v312 = vunpack.c.l.b16 %v204
    %v313 = vunpack.c.h.b16 %v204
    %v314 = vunpack.c.l.b16 %v205
    %v315 = vunpack.c.h.b16 %v205
    %v316 = vunpack.c.l.b16 %v206
    %v317 = vunpack.c.h.b16 %v206
    %v318 = vunpack.c.l.b16 %v207
    %v319 = vunpack.c.h.b16 %v207
    %v320 = vunpack.c.l.b16 %v208
    %v321 = vunpack.c.h.b16 %v208
    %v322 = vunpack.c.l.b16 %v209
    %v323 = vunpack.c.h.b16 %v209
    %v324 = vunpack.c.l.b16 %v210
    %v325 = vunpack.c.h.b16 %v210
    %v326 = vunpack.c.l.b16 %v211
    %v327 = vunpack.c.h.b16 %v211
    %v328 = vunpack.c.l.b16 %v212
    %v329 = vunpack.c.h.b16 %v212
    %v330 = vunpack.c.l.b16 %v213
    %v331 = vunpack.c.h.b16 %v213
    %v332 = vunpack.c.l.b16 %v214
    %v333 = vunpack.c.h.b16 %v214
    %v334 = vunpack.c.l.b16 %v215
    %v335 = vunpack.c.h.b16 %v215
    %v336 = vunpack.c.l.b16 %v216
    %v337 = vunpack.c.h.b16 %v216
    %v338 = vunpack.c.l.b16 %v217
    %v339 = vunpack.c.h.b16 %v217
    %v340 = vunpack.c.l.b16 %v218
    %v341 = vunpack.c.h.b16 %v218
    %v342 = vunpack.c.l.b16 %v219
    %v343 = vunpack.c.h.b16 %v219
    %v344 = vunpack.c.l.b16 %v220
    %v345 = vunpack.c.h.b16 %v220
    %v346 = vunpack.c.l.b16 %v221
    %v347 = vunpack.c.h.b16 %v221
    %v348 = vunpack.c.l.b16 %v222
    %v349 = vunpack.c.h.b16 %v222
    %v350 = vunpack.c.l.b16 %v223
    %v351 = vunpack.c.h.b16 %v223
    %v352 = vunpack.c.l.b16 %v224
    %v353 = vunpack.c.h.b16 %v224
    %v354 = vunpack.c.l.b16 %v225
    %v355 = vunpack.c.h.b16 %v225
    %v356 = vunpack.c.l.b16 %v226
    %v357 = vunpack.c.h.b16 %v226
    %v358 = vunpack.c.l.b16 %v227
    %v359 = vunpack.c.h.b16 %v227
    %v360 = vpack.c.b16 %v312, %v296
    %v361 = vpack.c.b16 %v313, %v297
    %v362 = vpack.c.b16 %v314, %v298
    %v363 = vpack.c.b16 %v315, %v299
    %v364 = vpack.c.b16 %v316, %v300
    %v365 = vpack.c.b16 %v317, %v301
    %v366 = vpack.c.b16 %v318, %v302
    %v367 = vpack.c.b16 %v319, %v303
    %v368 = vpack.c.b16 %v320, %v304
    %v369 = vpack.c.b16 %v321, %v305
    %v370 = vpack.c.b16 %v322, %v306
    %v371 = vpack.c.b16 %v323, %v307
    %v372 = vpack.c.b16 %v324, %v308
    %v373 = vpack.c.b16 %v325, %v309
    %v374 = vpack.c.b16 %v326, %v310
    %v375 = vpack.c.b16 %v327, %v311
    %v376 = vpack.c.b16 %v344, %v328
    %v377 = vpack.c.b16 %v345, %v329
    %v378 = vpack.c.b16 %v346, %v330
    %v379 = vpack.c.b16 %v347, %v331
    %v380 = vpack.c.b16 %v348, %v332
    %v381 = vpack.c.b16 %v349, %v333
    %v382 = vpack.c.b16 %v350, %v334
    %v383 = vpack.c.b16 %v351, %v335
    %v384 = vpack.c.b16 %v352, %v336
    %v385 = vpack.c.b16 %v353, %v337
    %v386 = vpack.c.b16 %v354, %v338
    %v387 = vpack.c.b16 %v355, %v339
    %v388 = vpack.c.b16 %v356, %v340
    %v389 = vpack.c.b16 %v357, %v341
    %v390 = vpack.c.b16 %v358, %v342
    %v391 = vpack.c.b16 %v359, %v343
    %v425 = vsel %vm137, %v195, 0
    %427 = vmatpush.bf16.msra.mxu0 0
    %428 = vmatpush.bf16.msra.mxu0 0
    %429 = vmatpush.bf16.msra.mxu0 0
    %430 = vmatpush.bf16.msra.mxu0 0
    %431 = vmatpush.bf16.msra.mxu0 0
    %432 = vmatpush.bf16.msra.mxu0 0
    %433 = vmatpush.bf16.msra.mxu0 %v376
    %434 = vmatpush.bf16.msra.mxu0 %v360
    %435 = vmatmul.bf16.gmra.mxu0 %v425
    %v436 = vpop.f32.mrf.mxu0
    %v437 = vadd.f32 %v232, %v436
    %v438 = vpop.f32.mrf.mxu0
    %439 = vdwg.mxu0
    %440 = vmatpush.bf16.msra.mxu0 0
    %441 = vmatpush.bf16.msra.mxu0 0
    %442 = vmatpush.bf16.msra.mxu0 0
    %443 = vmatpush.bf16.msra.mxu0 0
    %444 = vmatpush.bf16.msra.mxu0 0
    %445 = vmatpush.bf16.msra.mxu0 0
    %446 = vmatpush.bf16.msra.mxu0 %v377
    %447 = vmatpush.bf16.msra.mxu0 %v361
    %448 = vmatmul.bf16.gmra.mxu0 %v425
    %v449 = vpop.f32.mrf.mxu0
    %v450 = vadd.f32 %v233, %v449
    %v451 = vpop.f32.mrf.mxu0
    %452 = vdwg.mxu0
    %453 = vmatpush.bf16.msra.mxu0 0
    %454 = vmatpush.bf16.msra.mxu0 0
    %455 = vmatpush.bf16.msra.mxu0 0
    %456 = vmatpush.bf16.msra.mxu0 0
    %457 = vmatpush.bf16.msra.mxu0 0
    %458 = vmatpush.bf16.msra.mxu0 0
    %459 = vmatpush.bf16.msra.mxu0 %v378
    %460 = vmatpush.bf16.msra.mxu0 %v362
    %461 = vmatmul.bf16.gmra.mxu0 %v425
    %v462 = vpop.f32.mrf.mxu0
    %v463 = vadd.f32 %v234, %v462
    %v464 = vpop.f32.mrf.mxu0
    %465 = vdwg.mxu0
    %466 = vmatpush.bf16.msra.mxu0 0
    %467 = vmatpush.bf16.msra.mxu0 0
    %468 = vmatpush.bf16.msra.mxu0 0
    %469 = vmatpush.bf16.msra.mxu0 0
    %470 = vmatpush.bf16.msra.mxu0 0
    %471 = vmatpush.bf16.msra.mxu0 0
    %472 = vmatpush.bf16.msra.mxu0 %v379
    %473 = vmatpush.bf16.msra.mxu0 %v363
    %474 = vmatmul.bf16.gmra.mxu0 %v425
    %v475 = vpop.f32.mrf.mxu0
    %v476 = vadd.f32 %v235, %v475
    %v477 = vpop.f32.mrf.mxu0
    %478 = vdwg.mxu0
    %479 = vmatpush.bf16.msra.mxu0 0
    %480 = vmatpush.bf16.msra.mxu0 0
    %481 = vmatpush.bf16.msra.mxu0 0
    %482 = vmatpush.bf16.msra.mxu0 0
    %483 = vmatpush.bf16.msra.mxu0 0
    %484 = vmatpush.bf16.msra.mxu0 0
    %485 = vmatpush.bf16.msra.mxu0 %v380
    %486 = vmatpush.bf16.msra.mxu0 %v364
    %487 = vmatmul.bf16.gmra.mxu0 %v425
    %v488 = vpop.f32.mrf.mxu0
    %v489 = vadd.f32 %v236, %v488
    %v490 = vpop.f32.mrf.mxu0
    %491 = vdwg.mxu0
    %492 = vmatpush.bf16.msra.mxu0 0
    %493 = vmatpush.bf16.msra.mxu0 0
    %494 = vmatpush.bf16.msra.mxu0 0
    %495 = vmatpush.bf16.msra.mxu0 0
    %496 = vmatpush.bf16.msra.mxu0 0
    %497 = vmatpush.bf16.msra.mxu0 0
    %498 = vmatpush.bf16.msra.mxu0 %v381
    %499 = vmatpush.bf16.msra.mxu0 %v365
    %500 = vmatmul.bf16.gmra.mxu0 %v425
    %v501 = vpop.f32.mrf.mxu0
    %v502 = vadd.f32 %v237, %v501
    %v503 = vpop.f32.mrf.mxu0
    %504 = vdwg.mxu0
    %505 = vmatpush.bf16.msra.mxu0 0
    %506 = vmatpush.bf16.msra.mxu0 0
    %507 = vmatpush.bf16.msra.mxu0 0
    %508 = vmatpush.bf16.msra.mxu0 0
    %509 = vmatpush.bf16.msra.mxu0 0
    %510 = vmatpush.bf16.msra.mxu0 0
    %511 = vmatpush.bf16.msra.mxu0 %v382
    %512 = vmatpush.bf16.msra.mxu0 %v366
    %513 = vmatmul.bf16.gmra.mxu0 %v425
    %v514 = vpop.f32.mrf.mxu0
    %v515 = vadd.f32 %v238, %v514
    %v516 = vpop.f32.mrf.mxu0
    %517 = vdwg.mxu0
    %518 = vmatpush.bf16.msra.mxu0 0
    %519 = vmatpush.bf16.msra.mxu0 0
    %520 = vmatpush.bf16.msra.mxu0 0
    %521 = vmatpush.bf16.msra.mxu0 0
    %522 = vmatpush.bf16.msra.mxu0 0
    %523 = vmatpush.bf16.msra.mxu0 0
    %524 = vmatpush.bf16.msra.mxu0 %v383
    %525 = vmatpush.bf16.msra.mxu0 %v367
    %526 = vmatmul.bf16.gmra.mxu0 %v425
    %v527 = vpop.f32.mrf.mxu0
    %v528 = vadd.f32 %v239, %v527
    %v529 = vpop.f32.mrf.mxu0
    %530 = vdwg.mxu0
    %531 = vmatpush.bf16.msra.mxu0 0
    %532 = vmatpush.bf16.msra.mxu0 0
    %533 = vmatpush.bf16.msra.mxu0 0
    %534 = vmatpush.bf16.msra.mxu0 0
    %535 = vmatpush.bf16.msra.mxu0 0
    %536 = vmatpush.bf16.msra.mxu0 0
    %537 = vmatpush.bf16.msra.mxu0 %v384
    %538 = vmatpush.bf16.msra.mxu0 %v368
    %539 = vmatmul.bf16.gmra.mxu0 %v425
    %v540 = vpop.f32.mrf.mxu0
    %v541 = vadd.f32 %v240, %v540
    %v542 = vpop.f32.mrf.mxu0
    %543 = vdwg.mxu0
    %544 = vmatpush.bf16.msra.mxu0 0
    %545 = vmatpush.bf16.msra.mxu0 0
    %546 = vmatpush.bf16.msra.mxu0 0
    %547 = vmatpush.bf16.msra.mxu0 0
    %548 = vmatpush.bf16.msra.mxu0 0
    %549 = vmatpush.bf16.msra.mxu0 0
    %550 = vmatpush.bf16.msra.mxu0 %v385
    %551 = vmatpush.bf16.msra.mxu0 %v369
    %552 = vmatmul.bf16.gmra.mxu0 %v425
    %v553 = vpop.f32.mrf.mxu0
    %v554 = vadd.f32 %v241, %v553
    %v555 = vpop.f32.mrf.mxu0
    %556 = vdwg.mxu0
    %557 = vmatpush.bf16.msra.mxu0 0
    %558 = vmatpush.bf16.msra.mxu0 0
    %559 = vmatpush.bf16.msra.mxu0 0
    %560 = vmatpush.bf16.msra.mxu0 0
    %561 = vmatpush.bf16.msra.mxu0 0
    %562 = vmatpush.bf16.msra.mxu0 0
    %563 = vmatpush.bf16.msra.mxu0 %v386
    %564 = vmatpush.bf16.msra.mxu0 %v370
    %565 = vmatmul.bf16.gmra.mxu0 %v425
    %v566 = vpop.f32.mrf.mxu0
    %v567 = vadd.f32 %v242, %v566
    %v568 = vpop.f32.mrf.mxu0
    %569 = vdwg.mxu0
    %570 = vmatpush.bf16.msra.mxu0 0
    %571 = vmatpush.bf16.msra.mxu0 0
    %572 = vmatpush.bf16.msra.mxu0 0
    %573 = vmatpush.bf16.msra.mxu0 0
    %574 = vmatpush.bf16.msra.mxu0 0
    %575 = vmatpush.bf16.msra.mxu0 0
    %576 = vmatpush.bf16.msra.mxu0 %v387
    %577 = vmatpush.bf16.msra.mxu0 %v371
    %578 = vmatmul.bf16.gmra.mxu0 %v425
    %v579 = vpop.f32.mrf.mxu0
    %v580 = vadd.f32 %v243, %v579
    %v581 = vpop.f32.mrf.mxu0
    %582 = vdwg.mxu0
    %583 = vmatpush.bf16.msra.mxu0 0
    %584 = vmatpush.bf16.msra.mxu0 0
    %585 = vmatpush.bf16.msra.mxu0 0
    %586 = vmatpush.bf16.msra.mxu0 0
    %587 = vmatpush.bf16.msra.mxu0 0
    %588 = vmatpush.bf16.msra.mxu0 0
    %589 = vmatpush.bf16.msra.mxu0 %v388
    %590 = vmatpush.bf16.msra.mxu0 %v372
    %591 = vmatmul.bf16.gmra.mxu0 %v425
    %v592 = vpop.f32.mrf.mxu0
    %v593 = vadd.f32 %v244, %v592
    %v594 = vpop.f32.mrf.mxu0
    %595 = vdwg.mxu0
    %596 = vmatpush.bf16.msra.mxu0 0
    %597 = vmatpush.bf16.msra.mxu0 0
    %598 = vmatpush.bf16.msra.mxu0 0
    %599 = vmatpush.bf16.msra.mxu0 0
    %600 = vmatpush.bf16.msra.mxu0 0
    %601 = vmatpush.bf16.msra.mxu0 0
    %602 = vmatpush.bf16.msra.mxu0 %v389
    %603 = vmatpush.bf16.msra.mxu0 %v373
    %604 = vmatmul.bf16.gmra.mxu0 %v425
    %v605 = vpop.f32.mrf.mxu0
    %v606 = vadd.f32 %v245, %v605
    %v607 = vpop.f32.mrf.mxu0
    %608 = vdwg.mxu0
    %609 = vmatpush.bf16.msra.mxu0 0
    %610 = vmatpush.bf16.msra.mxu0 0
    %611 = vmatpush.bf16.msra.mxu0 0
    %612 = vmatpush.bf16.msra.mxu0 0
    %613 = vmatpush.bf16.msra.mxu0 0
    %614 = vmatpush.bf16.msra.mxu0 0
    %615 = vmatpush.bf16.msra.mxu0 %v390
    %616 = vmatpush.bf16.msra.mxu0 %v374
    %617 = vmatmul.bf16.gmra.mxu0 %v425
    %v618 = vpop.f32.mrf.mxu0
    %v619 = vadd.f32 %v246, %v618
    %v620 = vpop.f32.mrf.mxu0
    %621 = vdwg.mxu0
    %622 = vmatpush.bf16.msra.mxu0 0
    %623 = vmatpush.bf16.msra.mxu0 0
    %624 = vmatpush.bf16.msra.mxu0 0
    %625 = vmatpush.bf16.msra.mxu0 0
    %626 = vmatpush.bf16.msra.mxu0 0
    %627 = vmatpush.bf16.msra.mxu0 0
    %628 = vmatpush.bf16.msra.mxu0 %v391
    %629 = vmatpush.bf16.msra.mxu0 %v375
    %630 = vmatmul.bf16.gmra.mxu0 %v425
    %v631 = vpop.f32.mrf.mxu0
    %v632 = vadd.f32 %v247, %v631
    %v633 = vpop.f32.mrf.mxu0
    %634 = vdwg.mxu0
    %v635 = vmax.f32 %v437, 0.0
    %v636 = vmax.f32 %v450, 0.0
    %v637 = vmax.f32 %v463, 0.0
    %v638 = vmax.f32 %v476, 0.0
    %v639 = vmax.f32 %v489, 0.0
    %v640 = vmax.f32 %v502, 0.0
    %v641 = vmax.f32 %v515, 0.0
    %v642 = vmax.f32 %v528, 0.0
    %v643 = vmax.f32 %v541, 0.0
    %v644 = vmax.f32 %v554, 0.0
    %v645 = vmax.f32 %v567, 0.0
    %v646 = vmax.f32 %v580, 0.0
    %v647 = vmax.f32 %v593, 0.0
    %v648 = vmax.f32 %v606, 0.0
    %v649 = vmax.f32 %v619, 0.0
    %v650 = vmax.f32 %v632, 0.0
    %v651 = vld [vmem:[#allocation10] sm:$0xff]
    %v652 = vld [vmem:[#allocation10 + $0x8] sm:$0xff]
    %v655 = vperm.slane %v651, 0
    %v656 = vperm.slane %v651, 1
    %v657 = vperm.slane %v651, 2
    %v658 = vperm.slane %v651, 3
    %v659 = vperm.slane %v651, 4
    %v660 = vperm.slane %v651, 5
    %v661 = vperm.slane %v651, 6
    %v662 = vperm.slane %v651, 7
    %v663 = vperm.slane %v652, 0
    %v664 = vperm.slane %v652, 1
    %v665 = vperm.slane %v652, 2
    %v666 = vperm.slane %v652, 3
    %v667 = vperm.slane %v652, 4
    %v668 = vperm.slane %v652, 5
    %v669 = vperm.slane %v652, 6
    %v670 = vperm.slane %v652, 7
    %v687 = vmul.f32 %v635, %v655
    %v688 = vmul.f32 %v636, %v656
    %v689 = vmul.f32 %v637, %v657
    %v690 = vmul.f32 %v638, %v658
    %v691 = vmul.f32 %v639, %v659
    %v692 = vmul.f32 %v640, %v660
    %v693 = vmul.f32 %v641, %v661
    %v694 = vmul.f32 %v642, %v662
    %v695 = vmul.f32 %v643, %v663
    %v696 = vmul.f32 %v644, %v664
    %v697 = vmul.f32 %v645, %v665
    %v698 = vmul.f32 %v646, %v666
    %v699 = vmul.f32 %v647, %v667
    %v700 = vmul.f32 %v648, %v668
    %v701 = vmul.f32 %v649, %v669
    %v702 = vmul.f32 %v650, %v670
    %v703 = vadd.f32 %v687, %v688
    %v704 = vadd.f32 %v703, %v689
    %v705 = vadd.f32 %v704, %v690
    %706 = vadd.xlane.f32.xlu0 %v705
    %v707 = vpop.xlane.xlu0 %706
    %v708 = vadd.f32 %v691, %v692
    %v709 = vadd.f32 %v708, %v693
    %v710 = vadd.f32 %v709, %v694
    %711 = vadd.xlane.f32.xlu0 %v710
    %v712 = vpop.xlane.xlu0 %711
    %v713 = vadd.f32 %v695, %v696
    %v714 = vadd.f32 %v713, %v697
    %v715 = vadd.f32 %v714, %v698
    %716 = vadd.xlane.f32.xlu0 %v715
    %v717 = vpop.xlane.xlu0 %716
    %v718 = vadd.f32 %v699, %v700
    %v719 = vadd.f32 %v718, %v701
    %v720 = vadd.f32 %v719, %v702
    %721 = vadd.xlane.f32.xlu0 %v720
    %v722 = vpop.xlane.xlu0 %721
    %vm723 = vcmask 7168
    %v724 = vsel %vm723, %v707, %v712
    %vm725 = vcmask 15360
    %v726 = vsel %vm725, %v724, %v717
    %vm727 = vcmask 23552
    %v728 = vsel %vm727, %v726, %v722
    %v729 = vld [vmem:[%s6] sm:$0x1]
    %v731 = vperm.slane %v729, 0
    %v733 = vadd.f32 %v728, %v731
    %vm734 = vcmask 31744
    %735 = vst.msk [vmem:[%s7] sm:$0xff] %vm734, %v733
    // Predicated region
    $region54: #{tpu_custom_call.1} parent=1 // pred_check
      _
    $region55: #{tpu_custom_call.1} parent=1 // pred_check_branch
      %737 = sbr.rel (0) target = $region57
    $region56: #{tpu_custom_call.1} parent=1 // pred_region
      _
    $region57: #{tpu_custom_call.1} parent=1 // pred_fallthru
      _
    // Predicated region
    $region58: #{tpu_custom_call.1} parent=1 // pred_check
      _
    $region59: #{tpu_custom_call.1} parent=1 // pred_check_branch
      %739 = sbr.rel (0) target = $region61
    $region60: #{tpu_custom_call.1} parent=1 // pred_region
      _
    $region61: #{tpu_custom_call.1} parent=1 // pred_fallthru
      _
    %740 = vsyncpa [#allocation3], 1
    %741 = vsyncpa [#allocation5], 1
    %742 = vsyncpa [#allocation8], 1
    %743 = vsyncpa [#allocation11], 1

</llo_original>
